<compile_context>
chip_gen: v7x
topology: tpu7x:2x2x1
jax: 0.10.0
libtpu: 0.0.40
codegen_flags: <defaults>
</compile_context>

<pallas_src>
import jax
import jax.numpy as jnp
from jax import lax
from jax.experimental import pallas as pl
from jax.experimental.pallas import tpu as pltpu

BN_EPS = 1e-5


def conv_bn_relu_kernel(x_ref, w_ref, g_ref, b_ref, o_ref):
    # x_ref: (Cin, HW)   f32   flattened NCHW activation (N=1), native layout
    # w_ref: (Cin, Cout) bf16  1x1 conv weight, pre-transposed
    # g_ref: (1, Cout)   f32   BN gamma
    # b_ref: (1, Cout)   f32   BN beta
    # o_ref: (HW, Cout)  f32   lane-dense (Cout=128 on lanes) conv+BN+ReLU output
    x = x_ref[...]
    w = w_ref[...].astype(jnp.float32)

    # Y^T = X^T @ W, expressed as a contraction over axis 0 of both operands so the MXU
    # feeds the (Cin, HW) operand transposed; output minor dim is Cout=128 (lane-dense).
    yt = lax.dot_general(
        x, w,
        dimension_numbers=(((0,), (0,)), ((), ())),
        preferred_element_type=jnp.float32,
    )  # (HW, Cout)

    # BatchNorm (training mode): per-channel batch mean / biased variance over N*H*W,
    # i.e. a sublane (axis 0) reduction -> (1, Cout) row vectors.
    hw = yt.shape[0]
    inv_n = 1.0 / hw
    mean = jnp.sum(yt, axis=0, keepdims=True) * inv_n            # (1, Cout)
    diff = yt - mean
    var = jnp.sum(diff * diff, axis=0, keepdims=True) * inv_n    # (1, Cout)
    inv_std = lax.rsqrt(var + BN_EPS)

    # Fold BN affine into one per-channel scale/bias -> a single FMA + ReLU per element.
    scale = inv_std * g_ref[...]                                 # (1, Cout), one vreg
    bias = b_ref[...] - mean * scale                             # (1, Cout)

    o_ref[...] = jnp.maximum(yt * scale + bias, 0.0).astype(o_ref.dtype)


@jax.jit
def conv_bn_relu(x_nchw, w_oihw, gamma, beta):
    """x_nchw: (1, Cin, H, W) f32; w_oihw: (Cout, Cin, 1, 1); gamma/beta: (Cout,)."""
    N, Cin, H, W = x_nchw.shape
    Cout = w_oihw.shape[0]
    assert N == 1, "densenet transition block spec (N=1)"
    # TODO(synk): to further amortize the ~0.35-1us launch floor, fold batch (N>1) into
    # the sublane dim and/or fuse the adjacent densenet AvgPool2d as an epilogue; that
    # layer is not part of this module's forward, so it is out of scope here.
    HW = H * W

    # Activation: free contiguous reshape, stays in its native (Cin, HW) layout.
    x_mat = x_nchw.reshape(Cin, HW)
    # Weight: parameter-side prep (done once at init in a real model):
    # (Cin, Cout) bf16 halves the dominant HBM stream.
    w_mat = w_oihw.reshape(Cout, Cin).T.astype(jnp.bfloat16)
    g = gamma.reshape(1, Cout).astype(jnp.float32)
    b = beta.reshape(1, Cout).astype(jnp.float32)

    vmem = pl.BlockSpec(memory_space=pltpu.MemorySpace.VMEM)
    yt = pl.pallas_call(
        conv_bn_relu_kernel,
        out_shape=jax.ShapeDtypeStruct((HW, Cout), jnp.float32),
        in_specs=[vmem, vmem, vmem, vmem],
        out_specs=vmem,
    )(x_mat, w_mat, g, b)

    # (HW, Cout) -> NCHW: a 25 KB transpose handled by XLA inside the same jit.
    return yt.T.reshape(N, Cout, H, W)


def reference(x_nchw, w_oihw, gamma, beta):
    N, Cin, H, W = x_nchw.shape
    Cout = w_oihw.shape[0]
    x_mat = x_nchw.reshape(Cin, H * W)
    w_mat = w_oihw.reshape(Cout, Cin)
    y = w_mat @ x_mat                                            # (Cout, HW)
    m = jnp.mean(y, axis=1, keepdims=True)
    v = jnp.mean((y - m) ** 2, axis=1, keepdims=True)
    yn = (y - m) / jnp.sqrt(v + BN_EPS) * gamma[:, None] + beta[:, None]
    return jnp.maximum(yn, 0.0).reshape(N, Cout, H, W)


if __name__ == "__main__":
    key = jax.random.PRNGKey(0)
    k_x, k_w, k_g, k_b = jax.random.split(key, 4)

    N, Cin, H, W, Cout = 1, 896, 7, 7, 128

    x = jax.random.normal(k_x, (N, Cin, H, W), dtype=jnp.float32)
    w = jax.random.normal(k_w, (Cout, Cin, 1, 1), dtype=jnp.float32) * (1.0 / (Cin ** 0.5))
    gamma = 1.0 + 0.1 * jax.random.normal(k_g, (Cout,), dtype=jnp.float32)
    beta = 0.1 * jax.random.normal(k_b, (Cout,), dtype=jnp.float32)

    out = jax.block_until_ready(conv_bn_relu(x, w, gamma, beta))
    ref = jax.block_until_ready(reference(x, w, gamma, beta))

    assert out.shape == (N, Cout, H, W)
    # bf16 conv weights -> relaxed tolerance vs the all-f32 reference.
    assert jnp.allclose(out, ref, atol=3e-2, rtol=3e-2), float(jnp.max(jnp.abs(out - ref)))

    # TODO(synk): torch BatchNorm2d running_mean/running_var buffer updates are not
    # reproduced (forward output only), matching the previous version's scope.

    print("KERNEL_OK")
</pallas_src>

<mosaic_0001>
module attributes {stable_mosaic.version = 11 : i64} {
  func.func @conv_bn_relu_kernel(%arg0: memref<896x49xf32, #tpu.memory_space<vmem>>, %arg1: memref<896x128xbf16, #tpu.memory_space<vmem>>, %arg2: memref<1x128xf32, #tpu.memory_space<vmem>>, %arg3: memref<1x128xf32, #tpu.memory_space<vmem>>, %arg4: memref<49x128xf32, #tpu.memory_space<vmem>>) attributes {dimension_semantics = [], scalar_prefetch = 0 : i64, scratch_operands = 0 : i64, tpu.core_type = #tpu.core_type<tc>} {
    %c0 = arith.constant 0 : index
    %c0_0 = arith.constant 0 : index
    %0 = vector.load %arg0[%c0, %c0_0] : memref<896x49xf32, #tpu.memory_space<vmem>>, vector<896x49xf32>
    %c0_1 = arith.constant 0 : index
    %c0_2 = arith.constant 0 : index
    %1 = vector.load %arg1[%c0_1, %c0_2] : memref<896x128xbf16, #tpu.memory_space<vmem>>, vector<896x128xbf16>
    %2 = arith.extf %1 : vector<896x128xbf16> to vector<896x128xf32>
    %cst = arith.constant dense<0.000000e+00> : vector<49x128xf32>
    %3 = tpu.matmul %0, %2, %cst {dimension_numbers = #tpu.dot_dimension_numbers<[0], [0], [1], [1], [0, 1, 1, 1], [], []>} : vector<896x49xf32>, vector<896x128xf32>, vector<49x128xf32> -> vector<49x128xf32>
    %cst_3 = arith.constant dense<0.000000e+00> : vector<128xf32>
    %4 = vector.multi_reduction <add>, %3, %cst_3 [0] : vector<49x128xf32> to vector<128xf32>
    %5 = vector.shape_cast %4 : vector<128xf32> to vector<1x128xf32>
    %cst_4 = arith.constant 0.0204081628 : f32
    %6 = vector.broadcast %cst_4 : f32 to vector<1x128xf32>
    %7 = arith.mulf %5, %6 : vector<1x128xf32>
    %8 = vector.broadcast %7 : vector<1x128xf32> to vector<49x128xf32>
    %9 = arith.subf %3, %8 : vector<49x128xf32>
    %10 = arith.mulf %9, %9 : vector<49x128xf32>
    %cst_5 = arith.constant dense<0.000000e+00> : vector<128xf32>
    %11 = vector.multi_reduction <add>, %10, %cst_5 [0] : vector<49x128xf32> to vector<128xf32>
    %12 = vector.shape_cast %11 : vector<128xf32> to vector<1x128xf32>
    %cst_6 = arith.constant 0.0204081628 : f32
    %13 = vector.broadcast %cst_6 : f32 to vector<1x128xf32>
    %14 = arith.mulf %12, %13 : vector<1x128xf32>
    %cst_7 = arith.constant 9.99999974E-6 : f32
    %15 = vector.broadcast %cst_7 : f32 to vector<1x128xf32>
    %16 = arith.addf %14, %15 : vector<1x128xf32>
    %17 = math.rsqrt %16 : vector<1x128xf32>
    %c0_8 = arith.constant 0 : index
    %c0_9 = arith.constant 0 : index
    %18 = vector.load %arg2[%c0_8, %c0_9] : memref<1x128xf32, #tpu.memory_space<vmem>>, vector<1x128xf32>
    %19 = arith.mulf %17, %18 : vector<1x128xf32>
    %c0_10 = arith.constant 0 : index
    %c0_11 = arith.constant 0 : index
    %20 = vector.load %arg3[%c0_10, %c0_11] : memref<1x128xf32, #tpu.memory_space<vmem>>, vector<1x128xf32>
    %21 = arith.mulf %7, %19 : vector<1x128xf32>
    %22 = arith.subf %20, %21 : vector<1x128xf32>
    %23 = vector.broadcast %19 : vector<1x128xf32> to vector<49x128xf32>
    %24 = arith.mulf %3, %23 : vector<49x128xf32>
    %25 = vector.broadcast %22 : vector<1x128xf32> to vector<49x128xf32>
    %26 = arith.addf %24, %25 : vector<49x128xf32>
    %cst_12 = arith.constant 0.000000e+00 : f32
    %27 = vector.broadcast %cst_12 : f32 to vector<49x128xf32>
    %28 = arith.maximumf %26, %27 : vector<49x128xf32>
    %c0_13 = arith.constant 0 : index
    %c0_14 = arith.constant 0 : index
    %29 = vector.load %arg4[%c0_13, %c0_14] : memref<49x128xf32, #tpu.memory_space<vmem>>, vector<49x128xf32>
    tpu.vector_store %arg4[%c0_13, %c0_14], %28 {strides = array<i32>} : memref<49x128xf32, #tpu.memory_space<vmem>>, vector<49x128xf32>,
    return
  }
}

</mosaic_0001>

<llo_original>
// kernel: conv_bn_relu.1
$region0: #{conv_bn_relu.1}
  #allocation0 [shape = 'u32[]', space=smem, size = 0x4, offset = 0x4, fixed_abs, tag = 'smem constant byte address 0x4 - core index']
  #allocation1 [shape = 'u32[144,128]{1,0:T(1,128)}', space=vmem, size = 0x12000, scoped, tag = 'internal scratch']
  %s0 = inlined_call_operand.vmem [shape: f32[896,49], index: 0, kind: input, shape index: {}]
  %s1 = inlined_call_operand.vmem [shape: bf16[896,128], index: 1, kind: input, shape index: {}]
  %s2 = inlined_call_operand.vmem [shape: f32[1,128], index: 2, kind: input, shape index: {}]
  %s3 = inlined_call_operand.vmem [shape: f32[1,128], index: 3, kind: input, shape index: {}]
  %s4 = inlined_call_operand.vmem [shape: f32[49,128], index: 4, kind: output, shape index: {}]
  %s5 = sld [smem:[#allocation0]]
  $region26: #{conv_bn_relu.1} parent=0
    _
  %s7 = ssub.s32 1, %s5
  %s8 = scalar_select 0, %s7, %s5
  // Predicated region
  $region2: #{conv_bn_relu.1} parent=0 // pred_check
    _
  $region3: #{conv_bn_relu.1} parent=0 // pred_check_branch
    %10 = sbr.rel (0) target = $region5
  $region4: #{conv_bn_relu.1} parent=0 // pred_region
    _
  $region5: #{conv_bn_relu.1} parent=0 // pred_fallthru
    _
  // Predicated region
  $region6: #{conv_bn_relu.1} parent=0 // pred_check
    _
  $region7: #{conv_bn_relu.1} parent=0 // pred_check_branch
    %12 = sbr.rel (0) target = $region9
  $region8: #{conv_bn_relu.1} parent=0 // pred_region
    _
  $region9: #{conv_bn_relu.1} parent=0 // pred_fallthru
    _
  // Predicated region
  $region10: #{conv_bn_relu.1} parent=0 // pred_check
    _
  $region11: #{conv_bn_relu.1} parent=0 // pred_check_branch
    %14 = sbr.rel (0) target = $region13
  $region12: #{conv_bn_relu.1} parent=0 // pred_region
    _
  $region13: #{conv_bn_relu.1} parent=0 // pred_fallthru
    _
  // Predicated region
  $region14: #{conv_bn_relu.1} parent=0 // pred_check
    _
  $region15: #{conv_bn_relu.1} parent=0 // pred_check_branch
    %16 = sbr.rel (0) target = $region17
  $region16: #{conv_bn_relu.1} parent=0 // pred_region
    _
  $region17: #{conv_bn_relu.1} parent=0 // pred_fallthru
    _
  %v17 = vld [vmem:[%s0] sm:$0xff]
  %v18 = vld [vmem:[%s0 + $0x8] sm:$0xff]
  %v19 = vld [vmem:[%s0 + $0x10] sm:$0xff]
  %v20 = vld [vmem:[%s0 + $0x18] sm:$0xff]
  %v21 = vld [vmem:[%s0 + $0x20] sm:$0xff]
  %v22 = vld [vmem:[%s0 + $0x28] sm:$0xff]
  %v23 = vld [vmem:[%s0 + $0x30] sm:$0xff]
  %v24 = vld [vmem:[%s0 + $0x38] sm:$0xff]
  %v25 = vld [vmem:[%s0 + $0x40] sm:$0xff]
  %v26 = vld [vmem:[%s0 + $0x48] sm:$0xff]
  %v27 = vld [vmem:[%s0 + $0x50] sm:$0xff]
  %v28 = vld [vmem:[%s0 + $0x58] sm:$0xff]
  %v29 = vld [vmem:[%s0 + $0x60] sm:$0xff]
  %v30 = vld [vmem:[%s0 + $0x68] sm:$0xff]
  %v31 = vld [vmem:[%s0 + $0x70] sm:$0xff]
  %v32 = vld [vmem:[%s0 + $0x78] sm:$0xff]
  %v33 = vld [vmem:[%s0 + $0x80] sm:$0xff]
  %v34 = vld [vmem:[%s0 + $0x88] sm:$0xff]
  %v35 = vld [vmem:[%s0 + $0x90] sm:$0xff]
  %v36 = vld [vmem:[%s0 + $0x98] sm:$0xff]
  %v37 = vld [vmem:[%s0 + $0xa0] sm:$0xff]
  %v38 = vld [vmem:[%s0 + $0xa8] sm:$0xff]
  %v39 = vld [vmem:[%s0 + $0xb0] sm:$0xff]
  %v40 = vld [vmem:[%s0 + $0xb8] sm:$0xff]
  %v41 = vld [vmem:[%s0 + $0xc0] sm:$0xff]
  %v42 = vld [vmem:[%s0 + $0xc8] sm:$0xff]
  %v43 = vld [vmem:[%s0 + $0xd0] sm:$0xff]
  %v44 = vld [vmem:[%s0 + $0xd8] sm:$0xff]
  %v45 = vld [vmem:[%s0 + $0xe0] sm:$0xff]
  %v46 = vld [vmem:[%s0 + $0xe8] sm:$0xff]
  %v47 = vld [vmem:[%s0 + $0xf0] sm:$0xff]
  %v48 = vld [vmem:[%s0 + $0xf8] sm:$0xff]
  %v49 = vld [vmem:[%s0 + $0x100] sm:$0xff]
  %v50 = vld [vmem:[%s0 + $0x108] sm:$0xff]
  %v51 = vld [vmem:[%s0 + $0x110] sm:$0xff]
  %v52 = vld [vmem:[%s0 + $0x118] sm:$0xff]
  %v53 = vld [vmem:[%s0 + $0x120] sm:$0xff]
  %v54 = vld [vmem:[%s0 + $0x128] sm:$0xff]
  %v55 = vld [vmem:[%s0 + $0x130] sm:$0xff]
  %v56 = vld [vmem:[%s0 + $0x138] sm:$0xff]
  %v57 = vld [vmem:[%s0 + $0x140] sm:$0xff]
  %v58 = vld [vmem:[%s0 + $0x148] sm:$0xff]
  %v59 = vld [vmem:[%s0 + $0x150] sm:$0xff]
  %v60 = vld [vmem:[%s0 + $0x158] sm:$0xff]
  %v61 = vld [vmem:[%s0 + $0x160] sm:$0xff]
  %v62 = vld [vmem:[%s0 + $0x168] sm:$0xff]
  %v63 = vld [vmem:[%s0 + $0x170] sm:$0xff]
  %v64 = vld [vmem:[%s0 + $0x178] sm:$0xff]
  %v65 = vld [vmem:[%s0 + $0x180] sm:$0xff]
  %v66 = vld [vmem:[%s0 + $0x188] sm:$0xff]
  %v67 = vld [vmem:[%s0 + $0x190] sm:$0xff]
  %v68 = vld [vmem:[%s0 + $0x198] sm:$0xff]
  %v69 = vld [vmem:[%s0 + $0x1a0] sm:$0xff]
  %v70 = vld [vmem:[%s0 + $0x1a8] sm:$0xff]
  %v71 = vld [vmem:[%s0 + $0x1b0] sm:$0xff]
  %v72 = vld [vmem:[%s0 + $0x1b8] sm:$0xff]
  %v73 = vld [vmem:[%s0 + $0x1c0] sm:$0xff]
  %v74 = vld [vmem:[%s0 + $0x1c8] sm:$0xff]
  %v75 = vld [vmem:[%s0 + $0x1d0] sm:$0xff]
  %v76 = vld [vmem:[%s0 + $0x1d8] sm:$0xff]
  %v77 = vld [vmem:[%s0 + $0x1e0] sm:$0xff]
  %v78 = vld [vmem:[%s0 + $0x1e8] sm:$0xff]
  %v79 = vld [vmem:[%s0 + $0x1f0] sm:$0xff]
  %v80 = vld [vmem:[%s0 + $0x1f8] sm:$0xff]
  %v81 = vld [vmem:[%s0 + $0x200] sm:$0xff]
  %v82 = vld [vmem:[%s0 + $0x208] sm:$0xff]
  %v83 = vld [vmem:[%s0 + $0x210] sm:$0xff]
  %v84 = vld [vmem:[%s0 + $0x218] sm:$0xff]
  %v85 = vld [vmem:[%s0 + $0x220] sm:$0xff]
  %v86 = vld [vmem:[%s0 + $0x228] sm:$0xff]
  %v87 = vld [vmem:[%s0 + $0x230] sm:$0xff]
  %v88 = vld [vmem:[%s0 + $0x238] sm:$0xff]
  %v89 = vld [vmem:[%s0 + $0x240] sm:$0xff]
  %v90 = vld [vmem:[%s0 + $0x248] sm:$0xff]
  %v91 = vld [vmem:[%s0 + $0x250] sm:$0xff]
  %v92 = vld [vmem:[%s0 + $0x258] sm:$0xff]
  %v93 = vld [vmem:[%s0 + $0x260] sm:$0xff]
  %v94 = vld [vmem:[%s0 + $0x268] sm:$0xff]
  %v95 = vld [vmem:[%s0 + $0x270] sm:$0xff]
  %v96 = vld [vmem:[%s0 + $0x278] sm:$0xff]
  %v97 = vld [vmem:[%s0 + $0x280] sm:$0xff]
  %v98 = vld [vmem:[%s0 + $0x288] sm:$0xff]
  %v99 = vld [vmem:[%s0 + $0x290] sm:$0xff]
  %v100 = vld [vmem:[%s0 + $0x298] sm:$0xff]
  %v101 = vld [vmem:[%s0 + $0x2a0] sm:$0xff]
  %v102 = vld [vmem:[%s0 + $0x2a8] sm:$0xff]
  %v103 = vld [vmem:[%s0 + $0x2b0] sm:$0xff]
  %v104 = vld [vmem:[%s0 + $0x2b8] sm:$0xff]
  %v105 = vld [vmem:[%s0 + $0x2c0] sm:$0xff]
  %v106 = vld [vmem:[%s0 + $0x2c8] sm:$0xff]
  %v107 = vld [vmem:[%s0 + $0x2d0] sm:$0xff]
  %v108 = vld [vmem:[%s0 + $0x2d8] sm:$0xff]
  %v109 = vld [vmem:[%s0 + $0x2e0] sm:$0xff]
  %v110 = vld [vmem:[%s0 + $0x2e8] sm:$0xff]
  %v111 = vld [vmem:[%s0 + $0x2f0] sm:$0xff]
  %v112 = vld [vmem:[%s0 + $0x2f8] sm:$0xff]
  %v113 = vld [vmem:[%s0 + $0x300] sm:$0xff]
  %v114 = vld [vmem:[%s0 + $0x308] sm:$0xff]
  %v115 = vld [vmem:[%s0 + $0x310] sm:$0xff]
  %v116 = vld [vmem:[%s0 + $0x318] sm:$0xff]
  %v117 = vld [vmem:[%s0 + $0x320] sm:$0xff]
  %v118 = vld [vmem:[%s0 + $0x328] sm:$0xff]
  %v119 = vld [vmem:[%s0 + $0x330] sm:$0xff]
  %v120 = vld [vmem:[%s0 + $0x338] sm:$0xff]
  %v121 = vld [vmem:[%s0 + $0x340] sm:$0xff]
  %v122 = vld [vmem:[%s0 + $0x348] sm:$0xff]
  %v123 = vld [vmem:[%s0 + $0x350] sm:$0xff]
  %v124 = vld [vmem:[%s0 + $0x358] sm:$0xff]
  %v125 = vld [vmem:[%s0 + $0x360] sm:$0xff]
  %v126 = vld [vmem:[%s0 + $0x368] sm:$0xff]
  %v127 = vld [vmem:[%s0 + $0x370] sm:$0xff]
  %v128 = vld [vmem:[%s0 + $0x378] sm:$0xff]
  %v129 = vld [vmem:[%s1] sm:$0xf]
  %v130 = vld [vmem:[%s1 + $0x4] sm:$0xf]
  %v131 = vld [vmem:[%s1 + $0x8] sm:$0xf]
  %v132 = vld [vmem:[%s1 + $0xc] sm:$0xf]
  %v133 = vld [vmem:[%s1 + $0x10] sm:$0xf]
  %v134 = vld [vmem:[%s1 + $0x14] sm:$0xf]
  %v135 = vld [vmem:[%s1 + $0x18] sm:$0xf]
  %v136 = vld [vmem:[%s1 + $0x1c] sm:$0xf]
  %v137 = vld [vmem:[%s1 + $0x20] sm:$0xf]
  %v138 = vld [vmem:[%s1 + $0x24] sm:$0xf]
  %v139 = vld [vmem:[%s1 + $0x28] sm:$0xf]
  %v140 = vld [vmem:[%s1 + $0x2c] sm:$0xf]
  %v141 = vld [vmem:[%s1 + $0x30] sm:$0xf]
  %v142 = vld [vmem:[%s1 + $0x34] sm:$0xf]
  %v143 = vld [vmem:[%s1 + $0x38] sm:$0xf]
  %v144 = vld [vmem:[%s1 + $0x3c] sm:$0xf]
  %v145 = vld [vmem:[%s1 + $0x40] sm:$0xf]
  %v146 = vld [vmem:[%s1 + $0x44] sm:$0xf]
  %v147 = vld [vmem:[%s1 + $0x48] sm:$0xf]
  %v148 = vld [vmem:[%s1 + $0x4c] sm:$0xf]
  %v149 = vld [vmem:[%s1 + $0x50] sm:$0xf]
  %v150 = vld [vmem:[%s1 + $0x54] sm:$0xf]
  %v151 = vld [vmem:[%s1 + $0x58] sm:$0xf]
  %v152 = vld [vmem:[%s1 + $0x5c] sm:$0xf]
  %v153 = vld [vmem:[%s1 + $0x60] sm:$0xf]
  %v154 = vld [vmem:[%s1 + $0x64] sm:$0xf]
  %v155 = vld [vmem:[%s1 + $0x68] sm:$0xf]
  %v156 = vld [vmem:[%s1 + $0x6c] sm:$0xf]
  %v157 = vld [vmem:[%s1 + $0x70] sm:$0xf]
  %v158 = vld [vmem:[%s1 + $0x74] sm:$0xf]
  %v159 = vld [vmem:[%s1 + $0x78] sm:$0xf]
  %v160 = vld [vmem:[%s1 + $0x7c] sm:$0xf]
  %v161 = vld [vmem:[%s1 + $0x80] sm:$0xf]
  %v162 = vld [vmem:[%s1 + $0x84] sm:$0xf]
  %v163 = vld [vmem:[%s1 + $0x88] sm:$0xf]
  %v164 = vld [vmem:[%s1 + $0x8c] sm:$0xf]
  %v165 = vld [vmem:[%s1 + $0x90] sm:$0xf]
  %v166 = vld [vmem:[%s1 + $0x94] sm:$0xf]
  %v167 = vld [vmem:[%s1 + $0x98] sm:$0xf]
  %v168 = vld [vmem:[%s1 + $0x9c] sm:$0xf]
  %v169 = vld [vmem:[%s1 + $0xa0] sm:$0xf]
  %v170 = vld [vmem:[%s1 + $0xa4] sm:$0xf]
  %v171 = vld [vmem:[%s1 + $0xa8] sm:$0xf]
  %v172 = vld [vmem:[%s1 + $0xac] sm:$0xf]
  %v173 = vld [vmem:[%s1 + $0xb0] sm:$0xf]
  %v174 = vld [vmem:[%s1 + $0xb4] sm:$0xf]
  %v175 = vld [vmem:[%s1 + $0xb8] sm:$0xf]
  %v176 = vld [vmem:[%s1 + $0xbc] sm:$0xf]
  %v177 = vld [vmem:[%s1 + $0xc0] sm:$0xf]
  %v178 = vld [vmem:[%s1 + $0xc4] sm:$0xf]
  %v179 = vld [vmem:[%s1 + $0xc8] sm:$0xf]
  %v180 = vld [vmem:[%s1 + $0xcc] sm:$0xf]
  %v181 = vld [vmem:[%s1 + $0xd0] sm:$0xf]
  %v182 = vld [vmem:[%s1 + $0xd4] sm:$0xf]
  %v183 = vld [vmem:[%s1 + $0xd8] sm:$0xf]
  %v184 = vld [vmem:[%s1 + $0xdc] sm:$0xf]
  %v185 = vld [vmem:[%s1 + $0xe0] sm:$0xf]
  %v186 = vld [vmem:[%s1 + $0xe4] sm:$0xf]
  %v187 = vld [vmem:[%s1 + $0xe8] sm:$0xf]
  %v188 = vld [vmem:[%s1 + $0xec] sm:$0xf]
  %v189 = vld [vmem:[%s1 + $0xf0] sm:$0xf]
  %v190 = vld [vmem:[%s1 + $0xf4] sm:$0xf]
  %v191 = vld [vmem:[%s1 + $0xf8] sm:$0xf]
  %v192 = vld [vmem:[%s1 + $0xfc] sm:$0xf]
  %v193 = vld [vmem:[%s1 + $0x100] sm:$0xf]
  %v194 = vld [vmem:[%s1 + $0x104] sm:$0xf]
  %v195 = vld [vmem:[%s1 + $0x108] sm:$0xf]
  %v196 = vld [vmem:[%s1 + $0x10c] sm:$0xf]
  %v197 = vld [vmem:[%s1 + $0x110] sm:$0xf]
  %v198 = vld [vmem:[%s1 + $0x114] sm:$0xf]
  %v199 = vld [vmem:[%s1 + $0x118] sm:$0xf]
  %v200 = vld [vmem:[%s1 + $0x11c] sm:$0xf]
  %v201 = vld [vmem:[%s1 + $0x120] sm:$0xf]
  %v202 = vld [vmem:[%s1 + $0x124] sm:$0xf]
  %v203 = vld [vmem:[%s1 + $0x128] sm:$0xf]
  %v204 = vld [vmem:[%s1 + $0x12c] sm:$0xf]
  %v205 = vld [vmem:[%s1 + $0x130] sm:$0xf]
  %v206 = vld [vmem:[%s1 + $0x134] sm:$0xf]
  %v207 = vld [vmem:[%s1 + $0x138] sm:$0xf]
  %v208 = vld [vmem:[%s1 + $0x13c] sm:$0xf]
  %v209 = vld [vmem:[%s1 + $0x140] sm:$0xf]
  %v210 = vld [vmem:[%s1 + $0x144] sm:$0xf]
  %v211 = vld [vmem:[%s1 + $0x148] sm:$0xf]
  %v212 = vld [vmem:[%s1 + $0x14c] sm:$0xf]
  %v213 = vld [vmem:[%s1 + $0x150] sm:$0xf]
  %v214 = vld [vmem:[%s1 + $0x154] sm:$0xf]
  %v215 = vld [vmem:[%s1 + $0x158] sm:$0xf]
  %v216 = vld [vmem:[%s1 + $0x15c] sm:$0xf]
  %v217 = vld [vmem:[%s1 + $0x160] sm:$0xf]
  %v218 = vld [vmem:[%s1 + $0x164] sm:$0xf]
  %v219 = vld [vmem:[%s1 + $0x168] sm:$0xf]
  %v220 = vld [vmem:[%s1 + $0x16c] sm:$0xf]
  %v221 = vld [vmem:[%s1 + $0x170] sm:$0xf]
  %v222 = vld [vmem:[%s1 + $0x174] sm:$0xf]
  %v223 = vld [vmem:[%s1 + $0x178] sm:$0xf]
  %v224 = vld [vmem:[%s1 + $0x17c] sm:$0xf]
  %v225 = vld [vmem:[%s1 + $0x180] sm:$0xf]
  %v226 = vld [vmem:[%s1 + $0x184] sm:$0xf]
  %v227 = vld [vmem:[%s1 + $0x188] sm:$0xf]
  %v228 = vld [vmem:[%s1 + $0x18c] sm:$0xf]
  %v229 = vld [vmem:[%s1 + $0x190] sm:$0xf]
  %v230 = vld [vmem:[%s1 + $0x194] sm:$0xf]
  %v231 = vld [vmem:[%s1 + $0x198] sm:$0xf]
  %v232 = vld [vmem:[%s1 + $0x19c] sm:$0xf]
  %v233 = vld [vmem:[%s1 + $0x1a0] sm:$0xf]
  %v234 = vld [vmem:[%s1 + $0x1a4] sm:$0xf]
  %v235 = vld [vmem:[%s1 + $0x1a8] sm:$0xf]
  %v236 = vld [vmem:[%s1 + $0x1ac] sm:$0xf]
  %v237 = vld [vmem:[%s1 + $0x1b0] sm:$0xf]
  %v238 = vld [vmem:[%s1 + $0x1b4] sm:$0xf]
  %v239 = vld [vmem:[%s1 + $0x1b8] sm:$0xf]
  %v240 = vld [vmem:[%s1 + $0x1bc] sm:$0xf]
  %v241 = vunpack.c.l.bf16 %v129
  %v242 = vunpack.c.l.bf16 %v130
  %v243 = vunpack.c.l.bf16 %v131
  %v244 = vunpack.c.l.bf16 %v132
  %v245 = vunpack.c.l.bf16 %v133
  %v246 = vunpack.c.l.bf16 %v134
  %v247 = vunpack.c.l.bf16 %v135
  %v248 = vunpack.c.l.bf16 %v136
  %v249 = vunpack.c.l.bf16 %v137
  %v250 = vunpack.c.l.bf16 %v138
  %v251 = vunpack.c.l.bf16 %v139
  %v252 = vunpack.c.l.bf16 %v140
  %v253 = vunpack.c.l.bf16 %v141
  %v254 = vunpack.c.l.bf16 %v142
  %v255 = vunpack.c.l.bf16 %v143
  %v256 = vunpack.c.l.bf16 %v144
  %v257 = vunpack.c.l.bf16 %v145
  %v258 = vunpack.c.l.bf16 %v146
  %v259 = vunpack.c.l.bf16 %v147
  %v260 = vunpack.c.l.bf16 %v148
  %v261 = vunpack.c.l.bf16 %v149
  %v262 = vunpack.c.l.bf16 %v150
  %v263 = vunpack.c.l.bf16 %v151
  %v264 = vunpack.c.l.bf16 %v152
  %v265 = vunpack.c.l.bf16 %v153
  %v266 = vunpack.c.l.bf16 %v154
  %v267 = vunpack.c.l.bf16 %v155
  %v268 = vunpack.c.l.bf16 %v156
  %v269 = vunpack.c.l.bf16 %v157
  %v270 = vunpack.c.l.bf16 %v158
  %v271 = vunpack.c.l.bf16 %v159
  %v272 = vunpack.c.l.bf16 %v160
  %v273 = vunpack.c.l.bf16 %v161
  %v274 = vunpack.c.l.bf16 %v162
  %v275 = vunpack.c.l.bf16 %v163
  %v276 = vunpack.c.l.bf16 %v164
  %v277 = vunpack.c.l.bf16 %v165
  %v278 = vunpack.c.l.bf16 %v166
  %v279 = vunpack.c.l.bf16 %v167
  %v280 = vunpack.c.l.bf16 %v168
  %v281 = vunpack.c.l.bf16 %v169
  %v282 = vunpack.c.l.bf16 %v170
  %v283 = vunpack.c.l.bf16 %v171
  %v284 = vunpack.c.l.bf16 %v172
  %v285 = vunpack.c.l.bf16 %v173
  %v286 = vunpack.c.l.bf16 %v174
  %v287 = vunpack.c.l.bf16 %v175
  %v288 = vunpack.c.l.bf16 %v176
  %v289 = vunpack.c.l.bf16 %v177
  %v290 = vunpack.c.l.bf16 %v178
  %v291 = vunpack.c.l.bf16 %v179
  %v292 = vunpack.c.l.bf16 %v180
  %v293 = vunpack.c.l.bf16 %v181
  %v294 = vunpack.c.l.bf16 %v182
  %v295 = vunpack.c.l.bf16 %v183
  %v296 = vunpack.c.l.bf16 %v184
  %v297 = vunpack.c.l.bf16 %v185
  %v298 = vunpack.c.l.bf16 %v186
  %v299 = vunpack.c.l.bf16 %v187
  %v300 = vunpack.c.l.bf16 %v188
  %v301 = vunpack.c.l.bf16 %v189
  %v302 = vunpack.c.l.bf16 %v190
  %v303 = vunpack.c.l.bf16 %v191
  %v304 = vunpack.c.l.bf16 %v192
  %v305 = vunpack.c.l.bf16 %v193
  %v306 = vunpack.c.l.bf16 %v194
  %v307 = vunpack.c.l.bf16 %v195
  %v308 = vunpack.c.l.bf16 %v196
  %v309 = vunpack.c.l.bf16 %v197
  %v310 = vunpack.c.l.bf16 %v198
  %v311 = vunpack.c.l.bf16 %v199
  %v312 = vunpack.c.l.bf16 %v200
  %v313 = vunpack.c.l.bf16 %v201
  %v314 = vunpack.c.l.bf16 %v202
  %v315 = vunpack.c.l.bf16 %v203
  %v316 = vunpack.c.l.bf16 %v204
  %v317 = vunpack.c.l.bf16 %v205
  %v318 = vunpack.c.l.bf16 %v206
  %v319 = vunpack.c.l.bf16 %v207
  %v320 = vunpack.c.l.bf16 %v208
  %v321 = vunpack.c.l.bf16 %v209
  %v322 = vunpack.c.l.bf16 %v210
  %v323 = vunpack.c.l.bf16 %v211
  %v324 = vunpack.c.l.bf16 %v212
  %v325 = vunpack.c.l.bf16 %v213
  %v326 = vunpack.c.l.bf16 %v214
  %v327 = vunpack.c.l.bf16 %v215
  %v328 = vunpack.c.l.bf16 %v216
  %v329 = vunpack.c.l.bf16 %v217
  %v330 = vunpack.c.l.bf16 %v218
  %v331 = vunpack.c.l.bf16 %v219
  %v332 = vunpack.c.l.bf16 %v220
  %v333 = vunpack.c.l.bf16 %v221
  %v334 = vunpack.c.l.bf16 %v222
  %v335 = vunpack.c.l.bf16 %v223
  %v336 = vunpack.c.l.bf16 %v224
  %v337 = vunpack.c.l.bf16 %v225
  %v338 = vunpack.c.l.bf16 %v226
  %v339 = vunpack.c.l.bf16 %v227
  %v340 = vunpack.c.l.bf16 %v228
  %v341 = vunpack.c.l.bf16 %v229
  %v342 = vunpack.c.l.bf16 %v230
  %v343 = vunpack.c.l.bf16 %v231
  %v344 = vunpack.c.l.bf16 %v232
  %v345 = vunpack.c.l.bf16 %v233
  %v346 = vunpack.c.l.bf16 %v234
  %v347 = vunpack.c.l.bf16 %v235
  %v348 = vunpack.c.l.bf16 %v236
  %v349 = vunpack.c.l.bf16 %v237
  %v350 = vunpack.c.l.bf16 %v238
  %v351 = vunpack.c.l.bf16 %v239
  %v352 = vunpack.c.l.bf16 %v240
  %353 = vxpose.xlu0.b32.start [1/16] %v17, 128
  %354 = vxpose.xlu0.b32.cont [2/16] %v18, 128
  %355 = vxpose.xlu0.b32.cont [3/16] %v19, 128
  %356 = vxpose.xlu0.b32.cont [4/16] %v20, 128
  %357 = vxpose.xlu0.b32.cont [5/16] %v21, 128
  %358 = vxpose.xlu0.b32.cont [6/16] %v22, 128
  %359 = vxpose.xlu0.b32.cont [7/16] %v23, 128
  %360 = vxpose.xlu0.b32.cont [8/16] %v24, 128
  %361 = vxpose.xlu0.b32.cont [9/16] %v25, 128
  %362 = vxpose.xlu0.b32.cont [10/16] %v26, 128
  %363 = vxpose.xlu0.b32.cont [11/16] %v27, 128
  %364 = vxpose.xlu0.b32.cont [12/16] %v28, 128
  %365 = vxpose.xlu0.b32.cont [13/16] %v29, 128
  %366 = vxpose.xlu0.b32.cont [14/16] %v30, 128
  %367 = vxpose.xlu0.b32.cont [15/16] %v31, 128
  %368 = vxpose.xlu0.b32.end [16/16] %v32, 128
  %v369 = vpop.trf.xlu0
  %v370 = vpop.trf.xlu0
  %v371 = vpop.trf.xlu0
  %v372 = vpop.trf.xlu0
  %v373 = vpop.trf.xlu0
  %v374 = vpop.trf.xlu0
  %v375 = vpop.trf.xlu0
  %v376 = vpop.trf.xlu0
  %v377 = vpop.trf.xlu0
  %v378 = vpop.trf.xlu0
  %v379 = vpop.trf.xlu0
  %v380 = vpop.trf.xlu0
  %v381 = vpop.trf.xlu0
  %v382 = vpop.trf.xlu0
  %v383 = vpop.trf.xlu0
  %v384 = vpop.trf.xlu0
  %385 = vxpose.xlu0.b32.start [1/16] %v33, 128
  %386 = vxpose.xlu0.b32.cont [2/16] %v34, 128
  %387 = vxpose.xlu0.b32.cont [3/16] %v35, 128
  %388 = vxpose.xlu0.b32.cont [4/16] %v36, 128
  %389 = vxpose.xlu0.b32.cont [5/16] %v37, 128
  %390 = vxpose.xlu0.b32.cont [6/16] %v38, 128
  %391 = vxpose.xlu0.b32.cont [7/16] %v39, 128
  %392 = vxpose.xlu0.b32.cont [8/16] %v40, 128
  %393 = vxpose.xlu0.b32.cont [9/16] %v41, 128
  %394 = vxpose.xlu0.b32.cont [10/16] %v42, 128
  %395 = vxpose.xlu0.b32.cont [11/16] %v43, 128
  %396 = vxpose.xlu0.b32.cont [12/16] %v44, 128
  %397 = vxpose.xlu0.b32.cont [13/16] %v45, 128
  %398 = vxpose.xlu0.b32.cont [14/16] %v46, 128
  %399 = vxpose.xlu0.b32.cont [15/16] %v47, 128
  %400 = vxpose.xlu0.b32.end [16/16] %v48, 128
  %v401 = vpop.trf.xlu0
  %v402 = vpop.trf.xlu0
  %v403 = vpop.trf.xlu0
  %v404 = vpop.trf.xlu0
  %v405 = vpop.trf.xlu0
  %v406 = vpop.trf.xlu0
  %v407 = vpop.trf.xlu0
  %v408 = vpop.trf.xlu0
  %v409 = vpop.trf.xlu0
  %v410 = vpop.trf.xlu0
  %v411 = vpop.trf.xlu0
  %v412 = vpop.trf.xlu0
  %v413 = vpop.trf.xlu0
  %v414 = vpop.trf.xlu0
  %v415 = vpop.trf.xlu0
  %v416 = vpop.trf.xlu0
  %417 = vxpose.xlu0.b32.start [1/16] %v49, 128
  %418 = vxpose.xlu0.b32.cont [2/16] %v50, 128
  %419 = vxpose.xlu0.b32.cont [3/16] %v51, 128
  %420 = vxpose.xlu0.b32.cont [4/16] %v52, 128
  %421 = vxpose.xlu0.b32.cont [5/16] %v53, 128
  %422 = vxpose.xlu0.b32.cont [6/16] %v54, 128
  %423 = vxpose.xlu0.b32.cont [7/16] %v55, 128
  %424 = vxpose.xlu0.b32.cont [8/16] %v56, 128
  %425 = vxpose.xlu0.b32.cont [9/16] %v57, 128
  %426 = vxpose.xlu0.b32.cont [10/16] %v58, 128
  %427 = vxpose.xlu0.b32.cont [11/16] %v59, 128
  %428 = vxpose.xlu0.b32.cont [12/16] %v60, 128
  %429 = vxpose.xlu0.b32.cont [13/16] %v61, 128
  %430 = vxpose.xlu0.b32.cont [14/16] %v62, 128
  %431 = vxpose.xlu0.b32.cont [15/16] %v63, 128
  %432 = vxpose.xlu0.b32.end [16/16] %v64, 128
  %v433 = vpop.trf.xlu0
  %v434 = vpop.trf.xlu0
  %v435 = vpop.trf.xlu0
  %v436 = vpop.trf.xlu0
  %v437 = vpop.trf.xlu0
  %v438 = vpop.trf.xlu0
  %v439 = vpop.trf.xlu0
  %v440 = vpop.trf.xlu0
  %v441 = vpop.trf.xlu0
  %v442 = vpop.trf.xlu0
  %v443 = vpop.trf.xlu0
  %v444 = vpop.trf.xlu0
  %v445 = vpop.trf.xlu0
  %v446 = vpop.trf.xlu0
  %v447 = vpop.trf.xlu0
  %v448 = vpop.trf.xlu0
  %449 = vxpose.xlu0.b32.start [1/16] %v65, 128
  %450 = vxpose.xlu0.b32.cont [2/16] %v66, 128
  %451 = vxpose.xlu0.b32.cont [3/16] %v67, 128
  %452 = vxpose.xlu0.b32.cont [4/16] %v68, 128
  %453 = vxpose.xlu0.b32.cont [5/16] %v69, 128
  %454 = vxpose.xlu0.b32.cont [6/16] %v70, 128
  %455 = vxpose.xlu0.b32.cont [7/16] %v71, 128
  %456 = vxpose.xlu0.b32.cont [8/16] %v72, 128
  %457 = vxpose.xlu0.b32.cont [9/16] %v73, 128
  %458 = vxpose.xlu0.b32.cont [10/16] %v74, 128
  %459 = vxpose.xlu0.b32.cont [11/16] %v75, 128
  %460 = vxpose.xlu0.b32.cont [12/16] %v76, 128
  %461 = vxpose.xlu0.b32.cont [13/16] %v77, 128
  %462 = vxpose.xlu0.b32.cont [14/16] %v78, 128
  %463 = vxpose.xlu0.b32.cont [15/16] %v79, 128
  %464 = vxpose.xlu0.b32.end [16/16] %v80, 128
  %v465 = vpop.trf.xlu0
  %v466 = vpop.trf.xlu0
  %v467 = vpop.trf.xlu0
  %v468 = vpop.trf.xlu0
  %v469 = vpop.trf.xlu0
  %v470 = vpop.trf.xlu0
  %v471 = vpop.trf.xlu0
  %v472 = vpop.trf.xlu0
  %v473 = vpop.trf.xlu0
  %v474 = vpop.trf.xlu0
  %v475 = vpop.trf.xlu0
  %v476 = vpop.trf.xlu0
  %v477 = vpop.trf.xlu0
  %v478 = vpop.trf.xlu0
  %v479 = vpop.trf.xlu0
  %v480 = vpop.trf.xlu0
  %481 = vxpose.xlu0.b32.start [1/16] %v81, 128
  %482 = vxpose.xlu0.b32.cont [2/16] %v82, 128
  %483 = vxpose.xlu0.b32.cont [3/16] %v83, 128
  %484 = vxpose.xlu0.b32.cont [4/16] %v84, 128
  %485 = vxpose.xlu0.b32.cont [5/16] %v85, 128
  %486 = vxpose.xlu0.b32.cont [6/16] %v86, 128
  %487 = vxpose.xlu0.b32.cont [7/16] %v87, 128
  %488 = vxpose.xlu0.b32.cont [8/16] %v88, 128
  %489 = vxpose.xlu0.b32.cont [9/16] %v89, 128
  %490 = vxpose.xlu0.b32.cont [10/16] %v90, 128
  %491 = vxpose.xlu0.b32.cont [11/16] %v91, 128
  %492 = vxpose.xlu0.b32.cont [12/16] %v92, 128
  %493 = vxpose.xlu0.b32.cont [13/16] %v93, 128
  %494 = vxpose.xlu0.b32.cont [14/16] %v94, 128
  %495 = vxpose.xlu0.b32.cont [15/16] %v95, 128
  %496 = vxpose.xlu0.b32.end [16/16] %v96, 128
  %v497 = vpop.trf.xlu0
  %v498 = vpop.trf.xlu0
  %v499 = vpop.trf.xlu0
  %v500 = vpop.trf.xlu0
  %v501 = vpop.trf.xlu0
  %v502 = vpop.trf.xlu0
  %v503 = vpop.trf.xlu0
  %v504 = vpop.trf.xlu0
  %v505 = vpop.trf.xlu0
  %v506 = vpop.trf.xlu0
  %v507 = vpop.trf.xlu0
  %v508 = vpop.trf.xlu0
  %v509 = vpop.trf.xlu0
  %v510 = vpop.trf.xlu0
  %v511 = vpop.trf.xlu0
  %v512 = vpop.trf.xlu0
  %513 = vxpose.xlu0.b32.start [1/16] %v97, 128
  %514 = vxpose.xlu0.b32.cont [2/16] %v98, 128
  %515 = vxpose.xlu0.b32.cont [3/16] %v99, 128
  %516 = vxpose.xlu0.b32.cont [4/16] %v100, 128
  %517 = vxpose.xlu0.b32.cont [5/16] %v101, 128
  %518 = vxpose.xlu0.b32.cont [6/16] %v102, 128
  %519 = vxpose.xlu0.b32.cont [7/16] %v103, 128
  %520 = vxpose.xlu0.b32.cont [8/16] %v104, 128
  %521 = vxpose.xlu0.b32.cont [9/16] %v105, 128
  %522 = vxpose.xlu0.b32.cont [10/16] %v106, 128
  %523 = vxpose.xlu0.b32.cont [11/16] %v107, 128
  %524 = vxpose.xlu0.b32.cont [12/16] %v108, 128
  %525 = vxpose.xlu0.b32.cont [13/16] %v109, 128
  %526 = vxpose.xlu0.b32.cont [14/16] %v110, 128
  %527 = vxpose.xlu0.b32.cont [15/16] %v111, 128
  %528 = vxpose.xlu0.b32.end [16/16] %v112, 128
  %v529 = vpop.trf.xlu0
  %v530 = vpop.trf.xlu0
  %v531 = vpop.trf.xlu0
  %v532 = vpop.trf.xlu0
  %v533 = vpop.trf.xlu0
  %v534 = vpop.trf.xlu0
  %v535 = vpop.trf.xlu0
  %v536 = vpop.trf.xlu0
  %v537 = vpop.trf.xlu0
  %v538 = vpop.trf.xlu0
  %v539 = vpop.trf.xlu0
  %v540 = vpop.trf.xlu0
  %v541 = vpop.trf.xlu0
  %v542 = vpop.trf.xlu0
  %v543 = vpop.trf.xlu0
  %v544 = vpop.trf.xlu0
  %545 = vxpose.xlu0.b32.start [1/16] %v113, 128
  %546 = vxpose.xlu0.b32.cont [2/16] %v114, 128
  %547 = vxpose.xlu0.b32.cont [3/16] %v115, 128
  %548 = vxpose.xlu0.b32.cont [4/16] %v116, 128
  %549 = vxpose.xlu0.b32.cont [5/16] %v117, 128
  %550 = vxpose.xlu0.b32.cont [6/16] %v118, 128
  %551 = vxpose.xlu0.b32.cont [7/16] %v119, 128
  %552 = vxpose.xlu0.b32.cont [8/16] %v120, 128
  %553 = vxpose.xlu0.b32.cont [9/16] %v121, 128
  %554 = vxpose.xlu0.b32.cont [10/16] %v122, 128
  %555 = vxpose.xlu0.b32.cont [11/16] %v123, 128
  %556 = vxpose.xlu0.b32.cont [12/16] %v124, 128
  %557 = vxpose.xlu0.b32.cont [13/16] %v125, 128
  %558 = vxpose.xlu0.b32.cont [14/16] %v126, 128
  %559 = vxpose.xlu0.b32.cont [15/16] %v127, 128
  %560 = vxpose.xlu0.b32.end [16/16] %v128, 128
  %v561 = vpop.trf.xlu0
  %v562 = vpop.trf.xlu0
  %v563 = vpop.trf.xlu0
  %v564 = vpop.trf.xlu0
  %v565 = vpop.trf.xlu0
  %v566 = vpop.trf.xlu0
  %v567 = vpop.trf.xlu0
  %v568 = vpop.trf.xlu0
  %v569 = vpop.trf.xlu0
  %v570 = vpop.trf.xlu0
  %v571 = vpop.trf.xlu0
  %v572 = vpop.trf.xlu0
  %v573 = vpop.trf.xlu0
  %v574 = vpop.trf.xlu0
  %v575 = vpop.trf.xlu0
  %v576 = vpop.trf.xlu0
  %577 = vmatprep.subr.mxu0 0.0
  %578 = vmatpush1.msra.mxu0 %v241
  %579 = vmatprep.subr.mxu0 0.0
  %580 = vmatpush1.msra.mxu0 %v242
  %581 = vmatprep.subr.mxu0 0.0
  %582 = vmatpush1.msra.mxu0 %v243
  %583 = vmatprep.subr.mxu0 0.0
  %584 = vmatpush1.msra.mxu0 %v244
  %585 = vmatprep.subr.mxu0 0.0
  %586 = vmatpush1.msra.mxu0 %v245
  %587 = vmatprep.subr.mxu0 0.0
  %588 = vmatpush1.msra.mxu0 %v246
  %589 = vmatprep.subr.mxu0 0.0
  %590 = vmatpush1.msra.mxu0 %v247
  %591 = vmatprep.subr.mxu0 0.0
  %592 = vmatpush1.msra.mxu0 %v248
  %593 = vmatprep.subr.mxu0 0.0
  %594 = vmatpush1.msra.mxu0 %v249
  %595 = vmatprep.subr.mxu0 0.0
  %596 = vmatpush1.msra.mxu0 %v250
  %597 = vmatprep.subr.mxu0 0.0
  %598 = vmatpush1.msra.mxu0 %v251
  %599 = vmatprep.subr.mxu0 0.0
  %600 = vmatpush1.msra.mxu0 %v252
  %601 = vmatprep.subr.mxu0 0.0
  %602 = vmatpush1.msra.mxu0 %v253
  %603 = vmatprep.subr.mxu0 0.0
  %604 = vmatpush1.msra.mxu0 %v254
  %605 = vmatprep.subr.mxu0 0.0
  %606 = vmatpush1.msra.mxu0 %v255
  %607 = vmatprep.subr.mxu0 0.0
  %608 = vmatpush1.msra.mxu0 %v256
  %609 = vmatprep.subr.mxu0 0.0
  %610 = vmatpush1.msra.mxu0 %v257
  %611 = vmatprep.subr.mxu0 0.0
  %612 = vmatpush1.msra.mxu0 %v258
  %613 = vmatprep.subr.mxu0 0.0
  %614 = vmatpush1.msra.mxu0 %v259
  %615 = vmatprep.subr.mxu0 0.0
  %616 = vmatpush1.msra.mxu0 %v260
  %617 = vmatprep.subr.mxu0 0.0
  %618 = vmatpush1.msra.mxu0 %v261
  %619 = vmatprep.subr.mxu0 0.0
  %620 = vmatpush1.msra.mxu0 %v262
  %621 = vmatprep.subr.mxu0 0.0
  %622 = vmatpush1.msra.mxu0 %v263
  %623 = vmatprep.subr.mxu0 0.0
  %624 = vmatpush1.msra.mxu0 %v264
  %625 = vmatprep.subr.mxu0 0.0
  %626 = vmatpush1.msra.mxu0 %v265
  %627 = vmatprep.subr.mxu0 0.0
  %628 = vmatpush1.msra.mxu0 %v266
  %629 = vmatprep.subr.mxu0 0.0
  %630 = vmatpush1.msra.mxu0 %v267
  %631 = vmatprep.subr.mxu0 0.0
  %632 = vmatpush1.msra.mxu0 %v268
  %633 = vmatprep.subr.mxu0 0.0
  %634 = vmatpush1.msra.mxu0 %v269
  %635 = vmatprep.subr.mxu0 0.0
  %636 = vmatpush1.msra.mxu0 %v270
  %637 = vmatprep.subr.mxu0 0.0
  %638 = vmatpush1.msra.mxu0 %v271
  %639 = vmatprep.subr.mxu0 0.0
  %640 = vmatpush1.msra.mxu0 %v272
  %641 = vmatprep.mubr.f32.mxu0 %v401
  %642 = vmatmul.mubr.f32.gmra.mrb[0].mxu0 %v369
  %v643 = vpop.f32.mrb[0].mxu0
  %v644 = vadd.f32 0.0, %v643
  %v645 = vpop.f32.mrb[0].mxu0
  %646 = vmatprep.mubr.f32.mxu0 %v402
  %647 = vmatmul.mubr.f32.gmra.mrb[0].mxu0 %v370
  %v648 = vpop.f32.mrb[0].mxu0
  %v649 = vadd.f32 0.0, %v648
  %v650 = vpop.f32.mrb[0].mxu0
  %651 = vmatprep.mubr.f32.mxu0 %v403
  %652 = vmatmul.mubr.f32.gmra.mrb[0].mxu0 %v371
  %v653 = vpop.f32.mrb[0].mxu0
  %v654 = vadd.f32 0.0, %v653
  %v655 = vpop.f32.mrb[0].mxu0
  %656 = vmatprep.mubr.f32.mxu0 %v404
  %657 = vmatmul.mubr.f32.gmra.mrb[0].mxu0 %v372
  %v658 = vpop.f32.mrb[0].mxu0
  %v659 = vadd.f32 0.0, %v658
  %v660 = vpop.f32.mrb[0].mxu0
  %661 = vmatprep.mubr.f32.mxu0 %v405
  %662 = vmatmul.mubr.f32.gmra.mrb[0].mxu0 %v373
  %v663 = vpop.f32.mrb[0].mxu0
  %v664 = vadd.f32 0.0, %v663
  %v665 = vpop.f32.mrb[0].mxu0
  %666 = vmatprep.mubr.f32.mxu0 %v406
  %667 = vmatmul.mubr.f32.gmra.mrb[0].mxu0 %v374
  %v668 = vpop.f32.mrb[0].mxu0
  %v669 = vadd.f32 0.0, %v668
  %v670 = vpop.f32.mrb[0].mxu0
  %671 = vmatprep.mubr.f32.mxu0 %v407
  %672 = vmatmul.mubr.f32.gmra.mrb[0].mxu0 %v375
  %v673 = vpop.f32.mrb[0].mxu0
  %v674 = vadd.f32 0.0, %v673
  %v675 = vpop.f32.mrb[0].mxu0
  %676 = vdwg.mxu0
  %677 = vmatprep.subr.mxu0 0.0
  %678 = vmatpush1.msra.mxu0 %v273
  %679 = vmatprep.subr.mxu0 0.0
  %680 = vmatpush1.msra.mxu0 %v274
  %681 = vmatprep.subr.mxu0 0.0
  %682 = vmatpush1.msra.mxu0 %v275
  %683 = vmatprep.subr.mxu0 0.0
  %684 = vmatpush1.msra.mxu0 %v276
  %685 = vmatprep.subr.mxu0 0.0
  %686 = vmatpush1.msra.mxu0 %v277
  %687 = vmatprep.subr.mxu0 0.0
  %688 = vmatpush1.msra.mxu0 %v278
  %689 = vmatprep.subr.mxu0 0.0
  %690 = vmatpush1.msra.mxu0 %v279
  %691 = vmatprep.subr.mxu0 0.0
  %692 = vmatpush1.msra.mxu0 %v280
  %693 = vmatprep.subr.mxu0 0.0
  %694 = vmatpush1.msra.mxu0 %v281
  %695 = vmatprep.subr.mxu0 0.0
  %696 = vmatpush1.msra.mxu0 %v282
  %697 = vmatprep.subr.mxu0 0.0
  %698 = vmatpush1.msra.mxu0 %v283
  %699 = vmatprep.subr.mxu0 0.0
  %700 = vmatpush1.msra.mxu0 %v284
  %701 = vmatprep.subr.mxu0 0.0
  %702 = vmatpush1.msra.mxu0 %v285
  %703 = vmatprep.subr.mxu0 0.0
  %704 = vmatpush1.msra.mxu0 %v286
  %705 = vmatprep.subr.mxu0 0.0
  %706 = vmatpush1.msra.mxu0 %v287
  %707 = vmatprep.subr.mxu0 0.0
  %708 = vmatpush1.msra.mxu0 %v288
  %709 = vmatprep.subr.mxu0 0.0
  %710 = vmatpush1.msra.mxu0 %v289
  %711 = vmatprep.subr.mxu0 0.0
  %712 = vmatpush1.msra.mxu0 %v290
  %713 = vmatprep.subr.mxu0 0.0
  %714 = vmatpush1.msra.mxu0 %v291
  %715 = vmatprep.subr.mxu0 0.0
  %716 = vmatpush1.msra.mxu0 %v292
  %717 = vmatprep.subr.mxu0 0.0
  %718 = vmatpush1.msra.mxu0 %v293
  %719 = vmatprep.subr.mxu0 0.0
  %720 = vmatpush1.msra.mxu0 %v294
  %721 = vmatprep.subr.mxu0 0.0
  %722 = vmatpush1.msra.mxu0 %v295
  %723 = vmatprep.subr.mxu0 0.0
  %724 = vmatpush1.msra.mxu0 %v296
  %725 = vmatprep.subr.mxu0 0.0
  %726 = vmatpush1.msra.mxu0 %v297
  %727 = vmatprep.subr.mxu0 0.0
  %728 = vmatpush1.msra.mxu0 %v298
  %729 = vmatprep.subr.mxu0 0.0
  %730 = vmatpush1.msra.mxu0 %v299
  %731 = vmatprep.subr.mxu0 0.0
  %732 = vmatpush1.msra.mxu0 %v300
  %733 = vmatprep.subr.mxu0 0.0
  %734 = vmatpush1.msra.mxu0 %v301
  %735 = vmatprep.subr.mxu0 0.0
  %736 = vmatpush1.msra.mxu0 %v302
  %737 = vmatprep.subr.mxu0 0.0
  %738 = vmatpush1.msra.mxu0 %v303
  %739 = vmatprep.subr.mxu0 0.0
  %740 = vmatpush1.msra.mxu0 %v304
  %741 = vmatprep.mubr.f32.mxu0 %v465
  %742 = vmatmul.mubr.f32.gmra.mrb[0].mxu0 %v433
  %v743 = vpop.f32.mrb[0].mxu0
  %v744 = vadd.f32 %v644, %v743
  %v745 = vpop.f32.mrb[0].mxu0
  %746 = vmatprep.mubr.f32.mxu0 %v466
  %747 = vmatmul.mubr.f32.gmra.mrb[0].mxu0 %v434
  %v748 = vpop.f32.mrb[0].mxu0
  %v749 = vadd.f32 %v649, %v748
  %v750 = vpop.f32.mrb[0].mxu0
  %751 = vmatprep.mubr.f32.mxu0 %v467
  %752 = vmatmul.mubr.f32.gmra.mrb[0].mxu0 %v435
  %v753 = vpop.f32.mrb[0].mxu0
  %v754 = vadd.f32 %v654, %v753
  %v755 = vpop.f32.mrb[0].mxu0
  %756 = vmatprep.mubr.f32.mxu0 %v468
  %757 = vmatmul.mubr.f32.gmra.mrb[0].mxu0 %v436
  %v758 = vpop.f32.mrb[0].mxu0
  %v759 = vadd.f32 %v659, %v758
  %v760 = vpop.f32.mrb[0].mxu0
  %761 = vmatprep.mubr.f32.mxu0 %v469
  %762 = vmatmul.mubr.f32.gmra.mrb[0].mxu0 %v437
  %v763 = vpop.f32.mrb[0].mxu0
  %v764 = vadd.f32 %v664, %v763
  %v765 = vpop.f32.mrb[0].mxu0
  %766 = vmatprep.mubr.f32.mxu0 %v470
  %767 = vmatmul.mubr.f32.gmra.mrb[0].mxu0 %v438
  %v768 = vpop.f32.mrb[0].mxu0
  %v769 = vadd.f32 %v669, %v768
  %v770 = vpop.f32.mrb[0].mxu0
  %771 = vmatprep.mubr.f32.mxu0 %v471
  %772 = vmatmul.mubr.f32.gmra.mrb[0].mxu0 %v439
  %v773 = vpop.f32.mrb[0].mxu0
  %v774 = vadd.f32 %v674, %v773
  %v775 = vpop.f32.mrb[0].mxu0
  %776 = vdwg.mxu0
  %777 = vmatprep.subr.mxu0 0.0
  %778 = vmatpush1.msra.mxu0 %v305
  %779 = vmatprep.subr.mxu0 0.0
  %780 = vmatpush1.msra.mxu0 %v306
  %781 = vmatprep.subr.mxu0 0.0
  %782 = vmatpush1.msra.mxu0 %v307
  %783 = vmatprep.subr.mxu0 0.0
  %784 = vmatpush1.msra.mxu0 %v308
  %785 = vmatprep.subr.mxu0 0.0
  %786 = vmatpush1.msra.mxu0 %v309
  %787 = vmatprep.subr.mxu0 0.0
  %788 = vmatpush1.msra.mxu0 %v310
  %789 = vmatprep.subr.mxu0 0.0
  %790 = vmatpush1.msra.mxu0 %v311
  %791 = vmatprep.subr.mxu0 0.0
  %792 = vmatpush1.msra.mxu0 %v312
  %793 = vmatprep.subr.mxu0 0.0
  %794 = vmatpush1.msra.mxu0 %v313
  %795 = vmatprep.subr.mxu0 0.0
  %796 = vmatpush1.msra.mxu0 %v314
  %797 = vmatprep.subr.mxu0 0.0
  %798 = vmatpush1.msra.mxu0 %v315
  %799 = vmatprep.subr.mxu0 0.0
  %800 = vmatpush1.msra.mxu0 %v316
  %801 = vmatprep.subr.mxu0 0.0
  %802 = vmatpush1.msra.mxu0 %v317
  %803 = vmatprep.subr.mxu0 0.0
  %804 = vmatpush1.msra.mxu0 %v318
  %805 = vmatprep.subr.mxu0 0.0
  %806 = vmatpush1.msra.mxu0 %v319
  %807 = vmatprep.subr.mxu0 0.0
  %808 = vmatpush1.msra.mxu0 %v320
  %809 = vmatprep.subr.mxu0 0.0
  %810 = vmatpush1.msra.mxu0 %v321
  %811 = vmatprep.subr.mxu0 0.0
  %812 = vmatpush1.msra.mxu0 %v322
  %813 = vmatprep.subr.mxu0 0.0
  %814 = vmatpush1.msra.mxu0 %v323
  %815 = vmatprep.subr.mxu0 0.0
  %816 = vmatpush1.msra.mxu0 %v324
  %817 = vmatprep.subr.mxu0 0.0
  %818 = vmatpush1.msra.mxu0 %v325
  %819 = vmatprep.subr.mxu0 0.0
  %820 = vmatpush1.msra.mxu0 %v326
  %821 = vmatprep.subr.mxu0 0.0
  %822 = vmatpush1.msra.mxu0 %v327
  %823 = vmatprep.subr.mxu0 0.0
  %824 = vmatpush1.msra.mxu0 %v328
  %825 = vmatprep.subr.mxu0 0.0
  %826 = vmatpush1.msra.mxu0 %v329
  %827 = vmatprep.subr.mxu0 0.0
  %828 = vmatpush1.msra.mxu0 %v330
  %829 = vmatprep.subr.mxu0 0.0
  %830 = vmatpush1.msra.mxu0 %v331
  %831 = vmatprep.subr.mxu0 0.0
  %832 = vmatpush1.msra.mxu0 %v332
  %833 = vmatprep.subr.mxu0 0.0
  %834 = vmatpush1.msra.mxu0 %v333
  %835 = vmatprep.subr.mxu0 0.0
  %836 = vmatpush1.msra.mxu0 %v334
  %837 = vmatprep.subr.mxu0 0.0
  %838 = vmatpush1.msra.mxu0 %v335
  %839 = vmatprep.subr.mxu0 0.0
  %840 = vmatpush1.msra.mxu0 %v336
  %841 = vmatprep.mubr.f32.mxu0 %v529
  %842 = vmatmul.mubr.f32.gmra.mrb[0].mxu0 %v497
  %v843 = vpop.f32.mrb[0].mxu0
  %v844 = vadd.f32 %v744, %v843
  %v845 = vpop.f32.mrb[0].mxu0
  %846 = vmatprep.mubr.f32.mxu0 %v530
  %847 = vmatmul.mubr.f32.gmra.mrb[0].mxu0 %v498
  %v848 = vpop.f32.mrb[0].mxu0
  %v849 = vadd.f32 %v749, %v848
  %v850 = vpop.f32.mrb[0].mxu0
  %851 = vmatprep.mubr.f32.mxu0 %v531
  %852 = vmatmul.mubr.f32.gmra.mrb[0].mxu0 %v499
  %v853 = vpop.f32.mrb[0].mxu0
  %v854 = vadd.f32 %v754, %v853
  %v855 = vpop.f32.mrb[0].mxu0
  %856 = vmatprep.mubr.f32.mxu0 %v532
  %857 = vmatmul.mubr.f32.gmra.mrb[0].mxu0 %v500
  %v858 = vpop.f32.mrb[0].mxu0
  %v859 = vadd.f32 %v759, %v858
  %v860 = vpop.f32.mrb[0].mxu0
  %861 = vmatprep.mubr.f32.mxu0 %v533
  %862 = vmatmul.mubr.f32.gmra.mrb[0].mxu0 %v501
  %v863 = vpop.f32.mrb[0].mxu0
  %v864 = vadd.f32 %v764, %v863
  %v865 = vpop.f32.mrb[0].mxu0
  %866 = vmatprep.mubr.f32.mxu0 %v534
  %867 = vmatmul.mubr.f32.gmra.mrb[0].mxu0 %v502
  %v868 = vpop.f32.mrb[0].mxu0
  %v869 = vadd.f32 %v769, %v868
  %v870 = vpop.f32.mrb[0].mxu0
  %871 = vmatprep.mubr.f32.mxu0 %v535
  %872 = vmatmul.mubr.f32.gmra.mrb[0].mxu0 %v503
  %v873 = vpop.f32.mrb[0].mxu0
  %v874 = vadd.f32 %v774, %v873
  %v875 = vpop.f32.mrb[0].mxu0
  %876 = vdwg.mxu0
  %877 = vmatprep.subr.mxu0 0.0
  %878 = vmatpush1.msra.mxu0 %v337
  %879 = vmatprep.subr.mxu0 0.0
  %880 = vmatpush1.msra.mxu0 %v338
  %881 = vmatprep.subr.mxu0 0.0
  %882 = vmatpush1.msra.mxu0 %v339
  %883 = vmatprep.subr.mxu0 0.0
  %884 = vmatpush1.msra.mxu0 %v340
  %885 = vmatprep.subr.mxu0 0.0
  %886 = vmatpush1.msra.mxu0 %v341
  %887 = vmatprep.subr.mxu0 0.0
  %888 = vmatpush1.msra.mxu0 %v342
  %889 = vmatprep.subr.mxu0 0.0
  %890 = vmatpush1.msra.mxu0 %v343
  %891 = vmatprep.subr.mxu0 0.0
  %892 = vmatpush1.msra.mxu0 %v344
  %893 = vmatprep.subr.mxu0 0.0
  %894 = vmatpush1.msra.mxu0 %v345
  %895 = vmatprep.subr.mxu0 0.0
  %896 = vmatpush1.msra.mxu0 %v346
  %897 = vmatprep.subr.mxu0 0.0
  %898 = vmatpush1.msra.mxu0 %v347
  %899 = vmatprep.subr.mxu0 0.0
  %900 = vmatpush1.msra.mxu0 %v348
  %901 = vmatprep.subr.mxu0 0.0
  %902 = vmatpush1.msra.mxu0 %v349
  %903 = vmatprep.subr.mxu0 0.0
  %904 = vmatpush1.msra.mxu0 %v350
  %905 = vmatprep.subr.mxu0 0.0
  %906 = vmatpush1.msra.mxu0 %v351
  %907 = vmatprep.subr.mxu0 0.0
  %908 = vmatpush1.msra.mxu0 %v352
  %909 = vmatprep.subr.mxu0 0.0
  %910 = vmatpush1.msra.mxu0 0.0
  %911 = vmatprep.subr.mxu0 0.0
  %912 = vmatpush1.msra.mxu0 0.0
  %913 = vmatprep.subr.mxu0 0.0
  %914 = vmatpush1.msra.mxu0 0.0
  %915 = vmatprep.subr.mxu0 0.0
  %916 = vmatpush1.msra.mxu0 0.0
  %917 = vmatprep.subr.mxu0 0.0
  %918 = vmatpush1.msra.mxu0 0.0
  %919 = vmatprep.subr.mxu0 0.0
  %920 = vmatpush1.msra.mxu0 0.0
  %921 = vmatprep.subr.mxu0 0.0
  %922 = vmatpush1.msra.mxu0 0.0
  %923 = vmatprep.subr.mxu0 0.0
  %924 = vmatpush1.msra.mxu0 0.0
  %925 = vmatprep.subr.mxu0 0.0
  %926 = vmatpush1.msra.mxu0 0.0
  %927 = vmatprep.subr.mxu0 0.0
  %928 = vmatpush1.msra.mxu0 0.0
  %929 = vmatprep.subr.mxu0 0.0
  %930 = vmatpush1.msra.mxu0 0.0
  %931 = vmatprep.subr.mxu0 0.0
  %932 = vmatpush1.msra.mxu0 0.0
  %933 = vmatprep.subr.mxu0 0.0
  %934 = vmatpush1.msra.mxu0 0.0
  %935 = vmatprep.subr.mxu0 0.0
  %936 = vmatpush1.msra.mxu0 0.0
  %937 = vmatprep.subr.mxu0 0.0
  %938 = vmatpush1.msra.mxu0 0.0
  %939 = vmatprep.subr.mxu0 0.0
  %940 = vmatpush1.msra.mxu0 0.0
  %941 = vmatprep.mubr.f32.mxu0 0.0
  %942 = vmatmul.mubr.f32.gmra.mrb[0].mxu0 %v561
  %v943 = vpop.f32.mrb[0].mxu0
  %v944 = vadd.f32 %v844, %v943
  %v945 = vpop.f32.mrb[0].mxu0
  %946 = vmatprep.mubr.f32.mxu0 0.0
  %947 = vmatmul.mubr.f32.gmra.mrb[0].mxu0 %v562
  %v948 = vpop.f32.mrb[0].mxu0
  %v949 = vadd.f32 %v849, %v948
  %v950 = vpop.f32.mrb[0].mxu0
  %951 = vmatprep.mubr.f32.mxu0 0.0
  %952 = vmatmul.mubr.f32.gmra.mrb[0].mxu0 %v563
  %v953 = vpop.f32.mrb[0].mxu0
  %v954 = vadd.f32 %v854, %v953
  %v955 = vpop.f32.mrb[0].mxu0
  %956 = vmatprep.mubr.f32.mxu0 0.0
  %957 = vmatmul.mubr.f32.gmra.mrb[0].mxu0 %v564
  %v958 = vpop.f32.mrb[0].mxu0
  %v959 = vadd.f32 %v859, %v958
  %v960 = vpop.f32.mrb[0].mxu0
  %961 = vmatprep.mubr.f32.mxu0 0.0
  %962 = vmatmul.mubr.f32.gmra.mrb[0].mxu0 %v565
  %v963 = vpop.f32.mrb[0].mxu0
  %v964 = vadd.f32 %v864, %v963
  %v965 = vpop.f32.mrb[0].mxu0
  %966 = vmatprep.mubr.f32.mxu0 0.0
  %967 = vmatmul.mubr.f32.gmra.mrb[0].mxu0 %v566
  %v968 = vpop.f32.mrb[0].mxu0
  %v969 = vadd.f32 %v869, %v968
  %v970 = vpop.f32.mrb[0].mxu0
  %971 = vmatprep.mubr.f32.mxu0 0.0
  %972 = vmatmul.mubr.f32.gmra.mrb[0].mxu0 %v567
  %v973 = vpop.f32.mrb[0].mxu0
  %v974 = vadd.f32 %v874, %v973
  %v975 = vpop.f32.mrb[0].mxu0
  %976 = vdwg.mxu0
  %v977 = vadd.f32 %v944, %v949
  %v978 = vadd.f32 %v977, %v954
  %v979 = vadd.f32 %v978, %v959
  %v980 = vadd.f32 %v979, %v964
  %v981 = vadd.f32 %v980, %v969
  %vm982 = vcmask 1040384
  %v983 = vsel %vm982, %v974, 0.0
  %v984 = vadd.f32 %v981, %v983
  %v985 = vrot.slane %v984, 4
  %v986 = vadd.f32 %v984, %v985
  %v987 = vrot.slane %v986, 2
  %v988 = vadd.f32 %v986, %v987
  %v989 = vrot.slane %v988, 1
  %v990 = vadd.f32 %v988, %v989
  %v991 = vmul.f32 %v990, 0.020408163
  %v992 = vsub.f32 %v944, %v991
  %v993 = vsub.f32 %v949, %v991
  %v994 = vsub.f32 %v954, %v991
  %v995 = vsub.f32 %v959, %v991
  %v996 = vsub.f32 %v964, %v991
  %v997 = vsub.f32 %v969, %v991
  %v998 = vsub.f32 %v974, %v991
  %v999 = vmul.f32 %v992, %v992
  %v1000 = vmul.f32 %v993, %v993
  %v1001 = vmul.f32 %v994, %v994
  %v1002 = vmul.f32 %v995, %v995
  %v1003 = vmul.f32 %v996, %v996
  %v1004 = vmul.f32 %v997, %v997
  %v1005 = vmul.f32 %v998, %v998
  %v1006 = vadd.f32 %v999, %v1000
  %v1007 = vadd.f32 %v1006, %v1001
  %v1008 = vadd.f32 %v1007, %v1002
  %v1009 = vadd.f32 %v1008, %v1003
  %v1010 = vadd.f32 %v1009, %v1004
  %v1011 = vsel %vm982, %v1005, 0.0
  %v1012 = vadd.f32 %v1010, %v1011
  %v1013 = vrot.slane %v1012, 4
  %v1014 = vadd.f32 %v1012, %v1013
  %v1015 = vrot.slane %v1014, 2
  %v1016 = vadd.f32 %v1014, %v1015
  %v1017 = vrot.slane %v1016, 1
  %v1018 = vadd.f32 %v1016, %v1017
  %v1019 = vmul.f32 %v1018, 0.020408163
  %v1020 = vadd.f32 %v1019, 1e-05
  %v1021 = vrsqrt.pop %v1020
  %v1022 = vld [vmem:[%s2] sm:$0x1]
  %v1023 = vmul.f32 %v1021, %v1022
  %v1024 = vld [vmem:[%s3] sm:$0x1]
  %v1025 = vmul.f32 %v991, %v1023
  %v1026 = vsub.f32 %v1024, %v1025
  %v1027 = vlaneseq
  %v1028 = vshrl.u32 %v1027, 7
  %v1029 = vsub.s32 0, %v1028
  %v1030 = vrot.slane %v1023, %v1029
  %v1031 = vmul.f32 %v944, %v1030
  %v1032 = vmul.f32 %v949, %v1030
  %v1033 = vmul.f32 %v954, %v1030
  %v1034 = vmul.f32 %v959, %v1030
  %v1035 = vmul.f32 %v964, %v1030
  %v1036 = vmul.f32 %v969, %v1030
  %v1037 = vmul.f32 %v974, %v1030
  %v1039 = vlaneseq
  %v1040 = vshrl.u32 %v1039, 7
  %v1041 = vsub.s32 0, %v1040
  %v1042 = vrot.slane %v1026, %v1041
  %v1044 = vadd.f32 %v1031, %v1042
  %v1045 = vadd.f32 %v1032, %v1042
  %v1046 = vadd.f32 %v1033, %v1042
  %v1047 = vadd.f32 %v1034, %v1042
  %v1048 = vadd.f32 %v1035, %v1042
  %v1049 = vadd.f32 %v1036, %v1042
  %v1050 = vadd.f32 %v1037, %v1042
  %v1051 = vmax.f32 %v1044, 0.0
  %v1052 = vmax.f32 %v1045, 0.0
  %v1053 = vmax.f32 %v1046, 0.0
  %v1054 = vmax.f32 %v1047, 0.0
  %v1055 = vmax.f32 %v1048, 0.0
  %v1056 = vmax.f32 %v1049, 0.0
  %v1057 = vmax.f32 %v1050, 0.0
  %1058 = vst [vmem:[%s4] sm:$0xff] %v1051
  %1059 = vst [vmem:[%s4 + $0x8] sm:$0xff] %v1052
  %1060 = vst [vmem:[%s4 + $0x10] sm:$0xff] %v1053
  %1061 = vst [vmem:[%s4 + $0x18] sm:$0xff] %v1054
  %1062 = vst [vmem:[%s4 + $0x20] sm:$0xff] %v1055
  %1063 = vst [vmem:[%s4 + $0x28] sm:$0xff] %v1056
  %1064 = vst [vmem:[%s4 + $0x30] sm:$0x1] %v1057
  // Predicated region
  $region18: #{conv_bn_relu.1} parent=0 // pred_check
    _
  $region19: #{conv_bn_relu.1} parent=0 // pred_check_branch
    %1066 = sbr.rel (0) target = $region21
  $region20: #{conv_bn_relu.1} parent=0 // pred_region
    _
  $region21: #{conv_bn_relu.1} parent=0 // pred_fallthru
    _
  // Predicated region
  $region22: #{conv_bn_relu.1} parent=0 // pred_check
    _
  $region23: #{conv_bn_relu.1} parent=0 // pred_check_branch
    %1068 = sbr.rel (0) target = $region25
  $region24: #{conv_bn_relu.1} parent=0 // pred_region
    _
  $region25: #{conv_bn_relu.1} parent=0 // pred_fallthru
    _

</llo_original>
